<compile_context>
chip_gen: v5e
topology: v5e:2x2
jax: 0.10.0
libtpu: 0.0.40
codegen_flags: <defaults>
</compile_context>

<pallas_src>
import jax
import jax.numpy as jnp
from jax import lax
from jax.experimental import pallas as pl
from jax.experimental.pallas import tpu as pltpu


def _make_darn_loss_kernel(*, batch, num_attr, block_rows, margin,
                           lambda_rank, lambda_attr, assume_binary_targets):
    inv_bce = 1.0 / float(batch * num_attr)   # BCELoss mean over all elements
    inv_rank = 1.0 / float(batch)             # triplet mean over batch
    margin = float(margin)
    lambda_rank = float(lambda_rank)
    lambda_attr = float(lambda_attr)

    def kernel(pred_ref, attr_ref, anchor_ref, pos_ref, neg_ref,
               out_ref, bce_acc, tri_acc):
        step = pl.program_id(0)
        nsteps = pl.num_programs(0)

        @pl.when(step == 0)
        def _init():
            bce_acc[...] = jnp.zeros_like(bce_acc)
            tri_acc[...] = jnp.zeros_like(tri_acc)

        # Row-validity mask: guards the zero/garbage padding of a partial last tile.
        row = step * block_rows + lax.broadcasted_iota(
            jnp.int32, (block_rows, 1), 0)
        valid = row < batch                                       # (TB, 1)

        # ---- attribute BCE (nn.BCELoss, mean reduction, log clamped at -100) ----
        p = pred_ref[...].astype(jnp.float32)
        t = attr_ref[...].astype(jnp.float32)
        if assume_binary_targets:
            # 0/1 labels: select before the log -> one EUP log/elem instead of two.
            q = jnp.where(t > 0.5, p, 1.0 - p)
            bce = -jnp.maximum(jnp.log(q), -100.0)
        else:
            log_p = jnp.maximum(jnp.log(p), -100.0)
            log_1mp = jnp.maximum(jnp.log(1.0 - p), -100.0)
            bce = -(t * log_p + (1.0 - t) * log_1mp)
        bce = jnp.where(valid, bce, 0.0)                          # kill padded rows
        bce_acc[...] += jnp.sum(bce, keepdims=True)               # (1, 1)

        # ---- triplet ranking term (F.pairwise_distance, p=2, eps=1e-6) ----
        eps = 1e-6
        a = anchor_ref[...].astype(jnp.float32)
        dp = a - pos_ref[...].astype(jnp.float32) + eps
        dn = a - neg_ref[...].astype(jnp.float32) + eps
        pos_dist = jnp.sqrt(jnp.sum(dp * dp, axis=-1, keepdims=True))   # (TB, 1)
        neg_dist = jnp.sqrt(jnp.sum(dn * dn, axis=-1, keepdims=True))   # (TB, 1)
        tri = jnp.maximum(pos_dist - neg_dist + margin, 0.0)
        tri = jnp.where(valid, tri, 0.0)
        tri_acc[...] += jnp.sum(tri, keepdims=True)               # (1, 1)

        @pl.when(step == nsteps - 1)
        def _finalize():
            attr_loss = bce_acc[...] * inv_bce                    # (1, 1)
            rank_loss = tri_acc[...] * inv_rank                   # (1, 1)
            total = lambda_attr * attr_loss + lambda_rank * rank_loss
            lane = lax.broadcasted_iota(jnp.int32, out_ref.shape, 1)
            out_ref[...] = jnp.where(
                lane == 0, total,
                jnp.where(lane == 1, attr_loss,
                          jnp.where(lane == 2, rank_loss, 0.0)))

    return kernel


def _pick_block_rows(B, A, D, itemsize):
    """Largest batch tile that comfortably fits double-buffered scoped VMEM."""
    if B <= 512:
        return B                                  # single block == full dim is legal
    per_row = (2 * A + 3 * D) * itemsize          # 5 input tiles, bytes per row
    budget = 8 * 1024 * 1024                      # headroom under v5e's 16 MiB default
    tb = budget // (2 * per_row)                  # x2 for double buffering
    tb = max(8, min(1024, (tb // 8) * 8))         # multiple of 8 sublanes
    return int(tb)


def darn_loss(predictions, attributes, anchor_embed, pos_embed, neg_embed,
              *, margin: float = 0.3, lambda_rank: float = 1.0,
              lambda_attr: float = 1.0, block_rows: int | None = None,
              assume_binary_targets: bool = True):
    """Returns (total_loss, {'total_loss', 'attr_loss', 'rank_loss'}) as scalars."""
    B, A = predictions.shape
    Bd, D = anchor_embed.shape
    assert attributes.shape == (B, A)
    assert Bd == B and pos_embed.shape == (B, D) and neg_embed.shape == (B, D)

    if block_rows is None:
        itemsize = max(jnp.dtype(predictions.dtype).itemsize,
                       jnp.dtype(anchor_embed.dtype).itemsize)
        block_rows = _pick_block_rows(B, A, D, itemsize)

    nsteps = pl.cdiv(B, block_rows)

    kernel = _make_darn_loss_kernel(
        batch=B, num_attr=A, block_rows=block_rows, margin=margin,
        lambda_rank=lambda_rank, lambda_attr=lambda_attr,
        assume_binary_targets=assume_binary_targets)

    def row_spec(width):
        return pl.BlockSpec((block_rows, width), lambda i: (i, 0))

    grid_spec = pltpu.PrefetchScalarGridSpec(
        num_scalar_prefetch=0,
        grid=(nsteps,),
        in_specs=[row_spec(A), row_spec(A),
                  row_spec(D), row_spec(D), row_spec(D)],
        out_specs=pl.BlockSpec((1, 128), lambda i: (0, 0)),
        scratch_shapes=[pltpu.VMEM((1, 1), jnp.float32),   # bce partial sum
                        pltpu.VMEM((1, 1), jnp.float32)],  # triplet partial sum
    )

    out = pl.pallas_call(
        kernel,
        out_shape=jax.ShapeDtypeStruct((1, 128), jnp.float32),
        grid_spec=grid_spec,
        compiler_params=pltpu.CompilerParams(
            dimension_semantics=("arbitrary",)),
    )(predictions, attributes, anchor_embed, pos_embed, neg_embed)

    total_loss = out[0, 0]
    attr_loss = out[0, 1]
    rank_loss = out[0, 2]
    return total_loss, {
        "total_loss": total_loss,
        "attr_loss": attr_loss,
        "rank_loss": rank_loss,
    }


def _reference(predictions, attributes, anchor, pos, neg,
               margin=0.3, lambda_rank=1.0, lambda_attr=1.0):
    # Pure-JAX reference mirroring the PyTorch module.
    log_p = jnp.maximum(jnp.log(predictions), -100.0)
    log_1mp = jnp.maximum(jnp.log(1.0 - predictions), -100.0)
    attr_loss = jnp.mean(-(attributes * log_p + (1.0 - attributes) * log_1mp))
    eps = 1e-6
    pos_d = jnp.sqrt(jnp.sum((anchor - pos + eps) ** 2, axis=1))
    neg_d = jnp.sqrt(jnp.sum((anchor - neg + eps) ** 2, axis=1))
    rank_loss = jnp.mean(jnp.maximum(pos_d - neg_d + margin, 0.0))
    total = lambda_attr * attr_loss + lambda_rank * rank_loss
    return total, attr_loss, rank_loss


if __name__ == "__main__":
    # Small shapes; B chosen non-multiple-of-16 so the tiled path exercises a
    # masked partial last tile.
    B, A, D = 24, 128, 128

    key = jax.random.PRNGKey(0)
    k1, k2, k3, k4, k5 = jax.random.split(key, 5)

    predictions = jax.nn.sigmoid(jax.random.normal(k1, (B, A), jnp.float32))
    attributes = (jax.random.uniform(k2, (B, A)) > 0.5).astype(jnp.float32)
    anchor_embed = jax.random.normal(k3, (B, D), jnp.float32)
    pos_embed = jax.random.normal(k4, (B, D), jnp.float32)
    neg_embed = jax.random.normal(k5, (B, D), jnp.float32)

    ref_total, ref_attr, ref_rank = _reference(
        predictions, attributes, anchor_embed, pos_embed, neg_embed)

    # (a) multi-step tiled grid (2 steps, masked partial tile), binary-label BCE.
    total, parts = darn_loss(predictions, attributes,
                             anchor_embed, pos_embed, neg_embed,
                             margin=0.3, lambda_rank=1.0, lambda_attr=1.0,
                             block_rows=16)
    total = jax.block_until_ready(total)
    assert jnp.allclose(total, ref_total, rtol=1e-5, atol=1e-5), (total, ref_total)
    assert jnp.allclose(parts["attr_loss"], ref_attr, rtol=1e-5, atol=1e-5)
    assert jnp.allclose(parts["rank_loss"], ref_rank, rtol=1e-5, atol=1e-5)

    # (b) auto tile size + exact two-log nn.BCELoss path (fractional-target safe).
    total2, parts2 = darn_loss(predictions, attributes,
                               anchor_embed, pos_embed, neg_embed,
                               assume_binary_targets=False)
    total2 = jax.block_until_ready(total2)
    assert jnp.allclose(total2, ref_total, rtol=1e-5, atol=1e-5), (total2, ref_total)

    print("KERNEL_OK")
</pallas_src>

<mosaic_0001>
module attributes {stable_mosaic.version = 11 : i64} {
  func.func @kernel(%arg0: i32, %arg1: memref<16x128xf32, #tpu.memory_space<vmem>>, %arg2: memref<16x128xf32, #tpu.memory_space<vmem>>, %arg3: memref<16x128xf32, #tpu.memory_space<vmem>>, %arg4: memref<16x128xf32, #tpu.memory_space<vmem>>, %arg5: memref<16x128xf32, #tpu.memory_space<vmem>>, %arg6: memref<1x128xf32, #tpu.memory_space<vmem>>, %arg7: memref<1x1xf32, #tpu.memory_space<vmem>>, %arg8: memref<1x1xf32, #tpu.memory_space<vmem>>) attributes {dimension_semantics = [#tpu.dimension_semantics<arbitrary>], iteration_bounds = array<i64: 2>, scalar_prefetch = 0 : i64, scratch_operands = 2 : i64, tpu.core_type = #tpu.core_type<tc>, window_params = [{transform_indices = @transform_0, window_bounds = array<i64: 16, 128>}, {transform_indices = @transform_1, window_bounds = array<i64: 16, 128>}, {transform_indices = @transform_2, window_bounds = array<i64: 16, 128>}, {transform_indices = @transform_3, window_bounds = array<i64: 16, 128>}, {transform_indices = @transform_4, window_bounds = array<i64: 16, 128>}, {pipeline_mode = #tpu.pipeline_mode<synchronous>, transform_indices = @transform_5, window_bounds = array<i64: 1, 128>}]} {
    %c0_i32 = arith.constant 0 : i32
    %0 = arith.cmpi eq, %arg0, %c0_i32 : i32
    %1 = arith.extui %0 : i1 to i32
    %c0_i32_0 = arith.constant 0 : i32
    %2 = arith.cmpi ne, %1, %c0_i32_0 : i32
    scf.if %2 {
      %cst_32 = arith.constant 0.000000e+00 : f32
      %68 = vector.broadcast %cst_32 : f32 to vector<1x1xf32>
      %c0_33 = arith.constant 0 : index
      %c0_34 = arith.constant 0 : index
      %69 = vector.load %arg7[%c0_33, %c0_34] : memref<1x1xf32, #tpu.memory_space<vmem>>, vector<1x1xf32>
      tpu.vector_store %arg7[%c0_33, %c0_34], %68 {strides = array<i32>} : memref<1x1xf32, #tpu.memory_space<vmem>>, vector<1x1xf32>,
      %cst_35 = arith.constant 0.000000e+00 : f32
      %70 = vector.broadcast %cst_35 : f32 to vector<1x1xf32>
      %c0_36 = arith.constant 0 : index
      %c0_37 = arith.constant 0 : index
      %71 = vector.load %arg8[%c0_36, %c0_37] : memref<1x1xf32, #tpu.memory_space<vmem>>, vector<1x1xf32>
      tpu.vector_store %arg8[%c0_36, %c0_37], %70 {strides = array<i32>} : memref<1x1xf32, #tpu.memory_space<vmem>>, vector<1x1xf32>,
    } else {
    }
    %c16_i32 = arith.constant 16 : i32
    %3 = arith.muli %arg0, %c16_i32 : i32
    %4 = tpu.iota {dimensions = array<i32: 0>} : vector<16x1xi32>
    %5 = vector.broadcast %3 : i32 to vector<16x1xi32>
    %6 = arith.addi %5, %4 : vector<16x1xi32>
    %c24_i32 = arith.constant 24 : i32
    %7 = vector.broadcast %c24_i32 : i32 to vector<16x1xi32>
    %8 = arith.cmpi slt, %6, %7 : vector<16x1xi32>
    %c0 = arith.constant 0 : index
    %c0_1 = arith.constant 0 : index
    %9 = vector.load %arg1[%c0, %c0_1] : memref<16x128xf32, #tpu.memory_space<vmem>>, vector<16x128xf32>
    %c0_2 = arith.constant 0 : index
    %c0_3 = arith.constant 0 : index
    %10 = vector.load %arg2[%c0_2, %c0_3] : memref<16x128xf32, #tpu.memory_space<vmem>>, vector<16x128xf32>
    %cst = arith.constant 5.000000e-01 : f32
    %11 = vector.broadcast %cst : f32 to vector<16x128xf32>
    %12 = arith.cmpf ogt, %10, %11 : vector<16x128xf32>
    %cst_4 = arith.constant 1.000000e+00 : f32
    %13 = vector.broadcast %cst_4 : f32 to vector<16x128xf32>
    %14 = arith.subf %13, %9 : vector<16x128xf32>
    %15 = arith.select %12, %9, %14 : vector<16x128xi1>, vector<16x128xf32>
    %16 = math.log %15 : vector<16x128xf32>
    %cst_5 = arith.constant -1.000000e+02 : f32
    %17 = vector.broadcast %cst_5 : f32 to vector<16x128xf32>
    %18 = arith.maximumf %16, %17 : vector<16x128xf32>
    %cst_6 = arith.constant 0.000000e+00 : f32
    %19 = vector.broadcast %cst_6 : f32 to vector<16x128xf32>
    %20 = arith.subf %19, %18 : vector<16x128xf32>
    %cst_7 = arith.constant 0.000000e+00 : f32
    %21 = vector.shape_cast %8 : vector<16x1xi1> to vector<16x1xi1>
    %22 = vector.broadcast %21 : vector<16x1xi1> to vector<16x128xi1>
    %23 = vector.broadcast %cst_7 : f32 to vector<16x128xf32>
    %24 = arith.select %22, %20, %23 : vector<16x128xi1>, vector<16x128xf32>
    %c0_8 = arith.constant 0 : index
    %c0_9 = arith.constant 0 : index
    %25 = vector.load %arg7[%c0_8, %c0_9] : memref<1x1xf32, #tpu.memory_space<vmem>>, vector<1x1xf32>
    %26 = vector.shape_cast %24 : vector<16x128xf32> to vector<1x16x128xf32>
    %cst_10 = arith.constant dense<0.000000e+00> : vector<1xf32>
    %27 = vector.multi_reduction <add>, %26, %cst_10 [1, 2] : vector<1x16x128xf32> to vector<1xf32>
    %28 = vector.shape_cast %27 : vector<1xf32> to vector<1x1x1xf32>
    %29 = vector.extract %28[0, 0, 0] : f32 from vector<1x1x1xf32>
    %30 = vector.broadcast %29 : f32 to vector<1x1xf32>
    %31 = arith.addf %25, %30 : vector<1x1xf32>
    %c0_11 = arith.constant 0 : index
    %c0_12 = arith.constant 0 : index
    %32 = vector.load %arg7[%c0_11, %c0_12] : memref<1x1xf32, #tpu.memory_space<vmem>>, vector<1x1xf32>
    tpu.vector_store %arg7[%c0_11, %c0_12], %31 {strides = array<i32>} : memref<1x1xf32, #tpu.memory_space<vmem>>, vector<1x1xf32>,
    %c0_13 = arith.constant 0 : index
    %c0_14 = arith.constant 0 : index
    %33 = vector.load %arg3[%c0_13, %c0_14] : memref<16x128xf32, #tpu.memory_space<vmem>>, vector<16x128xf32>
    %c0_15 = arith.constant 0 : index
    %c0_16 = arith.constant 0 : index
    %34 = vector.load %arg4[%c0_15, %c0_16] : memref<16x128xf32, #tpu.memory_space<vmem>>, vector<16x128xf32>
    %35 = arith.subf %33, %34 : vector<16x128xf32>
    %cst_17 = arith.constant 9.99999997E-7 : f32
    %36 = vector.broadcast %cst_17 : f32 to vector<16x128xf32>
    %37 = arith.addf %35, %36 : vector<16x128xf32>
    %c0_18 = arith.constant 0 : index
    %c0_19 = arith.constant 0 : index
    %38 = vector.load %arg5[%c0_18, %c0_19] : memref<16x128xf32, #tpu.memory_space<vmem>>, vector<16x128xf32>
    %39 = arith.subf %33, %38 : vector<16x128xf32>
    %cst_20 = arith.constant 9.99999997E-7 : f32
    %40 = vector.broadcast %cst_20 : f32 to vector<16x128xf32>
    %41 = arith.addf %39, %40 : vector<16x128xf32>
    %42 = arith.mulf %37, %37 : vector<16x128xf32>
    %cst_21 = arith.constant dense<0.000000e+00> : vector<16xf32>
    %43 = vector.multi_reduction <add>, %42, %cst_21 [1] : vector<16x128xf32> to vector<16xf32>
    %44 = vector.shape_cast %43 : vector<16xf32> to vector<16x1xf32>
    %45 = math.sqrt %44 : vector<16x1xf32>
    %46 = arith.mulf %41, %41 : vector<16x128xf32>
    %cst_22 = arith.constant dense<0.000000e+00> : vector<16xf32>
    %47 = vector.multi_reduction <add>, %46, %cst_22 [1] : vector<16x128xf32> to vector<16xf32>
    %48 = vector.shape_cast %47 : vector<16xf32> to vector<16x1xf32>
    %49 = math.sqrt %48 : vector<16x1xf32>
    %50 = arith.subf %45, %49 : vector<16x1xf32>
    %cst_23 = arith.constant 3.000000e-01 : f32
    %51 = vector.broadcast %cst_23 : f32 to vector<16x1xf32>
    %52 = arith.addf %50, %51 : vector<16x1xf32>
    %cst_24 = arith.constant 0.000000e+00 : f32
    %53 = vector.broadcast %cst_24 : f32 to vector<16x1xf32>
    %54 = arith.maximumf %52, %53 : vector<16x1xf32>
    %cst_25 = arith.constant 0.000000e+00 : f32
    %55 = vector.broadcast %cst_25 : f32 to vector<16x1xf32>
    %56 = arith.select %8, %54, %55 : vector<16x1xi1>, vector<16x1xf32>
    %c0_26 = arith.constant 0 : index
    %c0_27 = arith.constant 0 : index
    %57 = vector.load %arg8[%c0_26, %c0_27] : memref<1x1xf32, #tpu.memory_space<vmem>>, vector<1x1xf32>
    %58 = vector.shape_cast %56 : vector<16x1xf32> to vector<1x16x1xf32>
    %cst_28 = arith.constant dense<0.000000e+00> : vector<1xf32>
    %59 = vector.multi_reduction <add>, %58, %cst_28 [1, 2] : vector<1x16x1xf32> to vector<1xf32>
    %60 = vector.shape_cast %59 : vector<1xf32> to vector<1x1x1xf32>
    %61 = vector.extract %60[0, 0, 0] : f32 from vector<1x1x1xf32>
    %62 = vector.broadcast %61 : f32 to vector<1x1xf32>
    %63 = arith.addf %57, %62 : vector<1x1xf32>
    %c0_29 = arith.constant 0 : index
    %c0_30 = arith.constant 0 : index
    %64 = vector.load %arg8[%c0_29, %c0_30] : memref<1x1xf32, #tpu.memory_space<vmem>>, vector<1x1xf32>
    tpu.vector_store %arg8[%c0_29, %c0_30], %63 {strides = array<i32>} : memref<1x1xf32, #tpu.memory_space<vmem>>, vector<1x1xf32>,
    %c1_i32 = arith.constant 1 : i32
    %65 = arith.cmpi eq, %arg0, %c1_i32 : i32
    %66 = arith.extui %65 : i1 to i32
    %c0_i32_31 = arith.constant 0 : i32
    %67 = arith.cmpi ne, %66, %c0_i32_31 : i32
    scf.if %67 {
      %c0_32 = arith.constant 0 : index
      %c0_33 = arith.constant 0 : index
      %68 = vector.load %arg7[%c0_32, %c0_33] : memref<1x1xf32, #tpu.memory_space<vmem>>, vector<1x1xf32>
      %cst_34 = arith.constant 3.25520843E-4 : f32
      %69 = vector.broadcast %cst_34 : f32 to vector<1x1xf32>
      %70 = arith.mulf %68, %69 : vector<1x1xf32>
      %c0_35 = arith.constant 0 : index
      %c0_36 = arith.constant 0 : index
      %71 = vector.load %arg8[%c0_35, %c0_36] : memref<1x1xf32, #tpu.memory_space<vmem>>, vector<1x1xf32>
      %cst_37 = arith.constant 0.0416666679 : f32
      %72 = vector.broadcast %cst_37 : f32 to vector<1x1xf32>
      %73 = arith.mulf %71, %72 : vector<1x1xf32>
      %cst_38 = arith.constant 1.000000e+00 : f32
      %74 = vector.broadcast %cst_38 : f32 to vector<1x1xf32>
      %75 = arith.mulf %74, %70 : vector<1x1xf32>
      %cst_39 = arith.constant 1.000000e+00 : f32
      %76 = vector.broadcast %cst_39 : f32 to vector<1x1xf32>
      %77 = arith.mulf %76, %73 : vector<1x1xf32>
      %78 = arith.addf %75, %77 : vector<1x1xf32>
      %79 = tpu.iota {dimensions = array<i32: 1>} : vector<1x128xi32>
      %c0_i32_40 = arith.constant 0 : i32
      %80 = vector.broadcast %c0_i32_40 : i32 to vector<1x128xi32>
      %81 = arith.cmpi eq, %79, %80 : vector<1x128xi32>
      %c1_i32_41 = arith.constant 1 : i32
      %82 = vector.broadcast %c1_i32_41 : i32 to vector<1x128xi32>
      %83 = arith.cmpi eq, %79, %82 : vector<1x128xi32>
      %c2_i32 = arith.constant 2 : i32
      %84 = vector.broadcast %c2_i32 : i32 to vector<1x128xi32>
      %85 = arith.cmpi eq, %79, %84 : vector<1x128xi32>
      %cst_42 = arith.constant 0.000000e+00 : f32
      %86 = vector.shape_cast %73 : vector<1x1xf32> to vector<1x1xf32>
      %87 = vector.broadcast %86 : vector<1x1xf32> to vector<1x128xf32>
      %88 = vector.broadcast %cst_42 : f32 to vector<1x128xf32>
      %89 = arith.select %85, %87, %88 : vector<1x128xi1>, vector<1x128xf32>
      %90 = vector.shape_cast %70 : vector<1x1xf32> to vector<1x1xf32>
      %91 = vector.broadcast %90 : vector<1x1xf32> to vector<1x128xf32>
      %92 = arith.select %83, %91, %89 : vector<1x128xi1>, vector<1x128xf32>
      %93 = vector.shape_cast %78 : vector<1x1xf32> to vector<1x1xf32>
      %94 = vector.broadcast %93 : vector<1x1xf32> to vector<1x128xf32>
      %95 = arith.select %81, %94, %92 : vector<1x128xi1>, vector<1x128xf32>
      %c0_43 = arith.constant 0 : index
      %c0_44 = arith.constant 0 : index
      %96 = vector.load %arg6[%c0_43, %c0_44] : memref<1x128xf32, #tpu.memory_space<vmem>>, vector<1x128xf32>
      tpu.vector_store %arg6[%c0_43, %c0_44], %95 {strides = array<i32>} : memref<1x128xf32, #tpu.memory_space<vmem>>, vector<1x128xf32>,
    } else {
    }
    return
  }
  func.func @transform_0(%arg0: i32) -> (i32, i32) {
    %c0_i32 = arith.constant 0 : i32
    %c0_i32_0 = arith.constant 0 : i32
    return %arg0, %c0_i32 : i32, i32
  }
  func.func @transform_1(%arg0: i32) -> (i32, i32) {
    %c0_i32 = arith.constant 0 : i32
    %c0_i32_0 = arith.constant 0 : i32
    return %arg0, %c0_i32 : i32, i32
  }
  func.func @transform_2(%arg0: i32) -> (i32, i32) {
    %c0_i32 = arith.constant 0 : i32
    %c0_i32_0 = arith.constant 0 : i32
    return %arg0, %c0_i32 : i32, i32
  }
  func.func @transform_3(%arg0: i32) -> (i32, i32) {
    %c0_i32 = arith.constant 0 : i32
    %c0_i32_0 = arith.constant 0 : i32
    return %arg0, %c0_i32 : i32, i32
  }
  func.func @transform_4(%arg0: i32) -> (i32, i32) {
    %c0_i32 = arith.constant 0 : i32
    %c0_i32_0 = arith.constant 0 : i32
    return %arg0, %c0_i32 : i32, i32
  }
  func.func @transform_5(%arg0: i32) -> (i32, i32) {
    %c0_i32 = arith.constant 0 : i32
    %c0_i32_0 = arith.constant 0 : i32
    %c0_i32_1 = arith.constant 0 : i32
    return %c0_i32, %c0_i32_0 : i32, i32
  }
}

</mosaic_0001>

<llo_original>
// kernel: tpu_custom_call.1
$region0: #{tpu_custom_call.1}
  #allocation0 [shape = 'u32[]', space=smem, size = 0x4, offset = 0x4, fixed_abs, tag = 'smem constant byte address 0x4 - core index']
  #allocation1 [shape = 'u32[72,128]{1,0:T(1,128)}', space=vmem, size = 0x9000, scoped, tag = 'internal scratch']
  #allocation2 [shape = 'f32[1,1]{1,0:T(1,128)}', space=vmem, size = 0x200, scoped, tag = 'scratch operand']
  #allocation3 [shape = 'f32[1,1]{1,0:T(1,128)}', space=vmem, size = 0x200, scoped, tag = 'scratch operand']
  %s0 = inlined_call_operand.hbm [shape: f32[24,128], index: 0, kind: input, shape index: {}]
  %s1 = inlined_call_operand.hbm [shape: f32[24,128], index: 1, kind: input, shape index: {}]
  %s2 = inlined_call_operand.hbm [shape: f32[24,128], index: 2, kind: input, shape index: {}]
  %s3 = inlined_call_operand.hbm [shape: f32[24,128], index: 3, kind: input, shape index: {}]
  %s4 = inlined_call_operand.hbm [shape: f32[24,128], index: 4, kind: input, shape index: {}]
  %s5 = inlined_call_operand.hbm [shape: f32[1,128], index: 5, kind: output, shape index: {}]
  %s6 = sld [smem:[#allocation0]]
  $region81: #{tpu_custom_call.1} parent=0
    _
  %s8 = ssub.s32 1, %s6
  %s9 = scalar_select 0, %s8, %s6
  $region1: #{tpu_custom_call.1} parent=0
    #allocation4 [shape = 'u8[16384]{0}', space=vmem, size = 0x4000, scoped, tag = 'input window, operand 0']
    #allocation5 [shape = 's32[2]{0}', space=sflag, size = 0x8, scoped, tag = 'scoped memory for tpu_custom_call.1']
    #allocation6 [shape = 's32[2]{0}', space=sflag, size = 0x8, scoped, tag = 'scoped memory for tpu_custom_call.1']
    #allocation7 [shape = 'u8[16384]{0}', space=vmem, size = 0x4000, scoped, tag = 'input window, operand 1']
    #allocation8 [shape = 's32[2]{0}', space=sflag, size = 0x8, scoped, tag = 'scoped memory for tpu_custom_call.1']
    #allocation9 [shape = 'u8[16384]{0}', space=vmem, size = 0x4000, scoped, tag = 'input window, operand 2']
    #allocation10 [shape = 'u8[16384]{0}', space=vmem, size = 0x4000, scoped, tag = 'input window, operand 3']
    #allocation11 [shape = 's32[2]{0}', space=sflag, size = 0x8, scoped, tag = 'scoped memory for tpu_custom_call.1']
    #allocation12 [shape = 'u8[16384]{0}', space=vmem, size = 0x4000, scoped, tag = 'input window, operand 4']
    #allocation13 [shape = 'u8[512]{0}', space=vmem, size = 0x400, scoped, tag = 'output window, operand 0, single buffered']
    %10 = vsyncpa [#allocation5], 0
    %s11 = scalar_lea.sflag [#allocation5], 1
    %12 = vsyncpa %s11, 0
    %13 = vsyncpa [#allocation8], 0
    %s14 = scalar_lea.sflag [#allocation8], 1
    %15 = vsyncpa %s14, 0
    %16 = vsyncpa [#allocation11], 0
    %s17 = scalar_lea.sflag [#allocation11], 1
    %18 = vsyncpa %s17, 0
    %19 = vsyncpa [#allocation6], 0
    loop: start=0, step=1, limit=4
    $region2: #{tpu_custom_call.1} parent=1 // loop_pre_header
      _
    $region3: #{tpu_custom_call.1} parent=1 // loop_header
      %s21 = sphi 0, %s25
      %p22 = scmp.ge.s32.totalorder %s21, 4
      %s31 = sphi 0, %s33
      %s34 = sphi 0, %s31
      %s35 = sphi 0, %s34
      %s51 = sphi 0, %s35
      %s57 = sphi 0, %s59
      %s60 = sphi 0, %s57
      %s61 = sphi 0, %s60
      %s77 = sphi 0, %s61
      %s83 = sphi 0, %s85
      %s86 = sphi 0, %s83
      %s87 = sphi 0, %s86
      %s103 = sphi 0, %s87
      %s109 = sphi 0, %s111
      %s112 = sphi 0, %s109
      %s113 = sphi 0, %s112
      %s129 = sphi 0, %s113
      %s135 = sphi 0, %s137
      %s138 = sphi 0, %s135
      %s139 = sphi 0, %s138
      %s155 = sphi 0, %s139
      %s159 = sphi 0, %s159
      %s161 = sphi 0, %s159
      %s162 = sphi 0, %s161
      %s176 = sphi 0, %s162
    $region4: #{tpu_custom_call.1} parent=1 // loop_header_branch
      %24 = sbr.rel (%p22) target = $region8
    $region5: #{tpu_custom_call.1} parent=1 // loop_body
      %s26 = ssub.s32 %s21, 1
      %s27 = ssub.s32 %s21, 2
      %s28 = sadd.s32 %s21, 1
      %s29 = ssub.s32 %s21, %s28
      %p30 = scmp.eq.s32.totalorder %s29, 0
      %s32 = sadd.s32 %s31, 1
      %s33 = scalar_select %p30, %s31, %s32
      %p36 = pneg %p30
      %p37 = scmp.eq.s32.totalorder %s21, 1
      %p38 = por %p36, %p37
      %p39 = scmp.ne.s32.totalorder %s31, %s34
      %p40 = scmp.eq.s32.totalorder %s21, 0
      %p41 = por %p39, %p40
      %p42 = scmp.ne.s32.totalorder %s31, %s34
      %p43 = scmp.eq.s32.totalorder %s26, 1
      %p44 = por %p42, %p43
      %p45 = scmp.ne.s32.totalorder %s34, %s35
      %p46 = scmp.eq.s32.totalorder %s26, 0
      %p47 = por %p45, %p46
      %p48 = scmp.ne.s32.totalorder %s34, %s35
      %p49 = scmp.eq.s32.totalorder %s27, 1
      %p50 = por %p48, %p49
      %p52 = scmp.ne.s32.totalorder %s35, %s51
      %p53 = scmp.eq.s32.totalorder %s27, 0
      %p54 = por %p52, %p53
      %s55 = ssub.s32 %s21, %s28
      %p56 = scmp.eq.s32.totalorder %s55, 0
      %s58 = sadd.s32 %s57, 1
      %s59 = scalar_select %p56, %s57, %s58
      %p62 = pneg %p56
      %p63 = scmp.eq.s32.totalorder %s21, 1
      %p64 = por %p62, %p63
      %p65 = scmp.ne.s32.totalorder %s57, %s60
      %p66 = scmp.eq.s32.totalorder %s21, 0
      %p67 = por %p65, %p66
      %p68 = scmp.ne.s32.totalorder %s57, %s60
      %p69 = scmp.eq.s32.totalorder %s26, 1
      %p70 = por %p68, %p69
      %p71 = scmp.ne.s32.totalorder %s60, %s61
      %p72 = scmp.eq.s32.totalorder %s26, 0
      %p73 = por %p71, %p72
      %p74 = scmp.ne.s32.totalorder %s60, %s61
      %p75 = scmp.eq.s32.totalorder %s27, 1
      %p76 = por %p74, %p75
      %p78 = scmp.ne.s32.totalorder %s61, %s77
      %p79 = scmp.eq.s32.totalorder %s27, 0
      %p80 = por %p78, %p79
      %s81 = ssub.s32 %s21, %s28
      %p82 = scmp.eq.s32.totalorder %s81, 0
      %s84 = sadd.s32 %s83, 1
      %s85 = scalar_select %p82, %s83, %s84
      %p88 = pneg %p82
      %p89 = scmp.eq.s32.totalorder %s21, 1
      %p90 = por %p88, %p89
      %p91 = scmp.ne.s32.totalorder %s83, %s86
      %p92 = scmp.eq.s32.totalorder %s21, 0
      %p93 = por %p91, %p92
      %p94 = scmp.ne.s32.totalorder %s83, %s86
      %p95 = scmp.eq.s32.totalorder %s26, 1
      %p96 = por %p94, %p95
      %p97 = scmp.ne.s32.totalorder %s86, %s87
      %p98 = scmp.eq.s32.totalorder %s26, 0
      %p99 = por %p97, %p98
      %p100 = scmp.ne.s32.totalorder %s86, %s87
      %p101 = scmp.eq.s32.totalorder %s27, 1
      %p102 = por %p100, %p101
      %p104 = scmp.ne.s32.totalorder %s87, %s103
      %p105 = scmp.eq.s32.totalorder %s27, 0
      %p106 = por %p104, %p105
      %s107 = ssub.s32 %s21, %s28
      %p108 = scmp.eq.s32.totalorder %s107, 0
      %s110 = sadd.s32 %s109, 1
      %s111 = scalar_select %p108, %s109, %s110
      %p114 = pneg %p108
      %p115 = scmp.eq.s32.totalorder %s21, 1
      %p116 = por %p114, %p115
      %p117 = scmp.ne.s32.totalorder %s109, %s112
      %p118 = scmp.eq.s32.totalorder %s21, 0
      %p119 = por %p117, %p118
      %p120 = scmp.ne.s32.totalorder %s109, %s112
      %p121 = scmp.eq.s32.totalorder %s26, 1
      %p122 = por %p120, %p121
      %p123 = scmp.ne.s32.totalorder %s112, %s113
      %p124 = scmp.eq.s32.totalorder %s26, 0
      %p125 = por %p123, %p124
      %p126 = scmp.ne.s32.totalorder %s112, %s113
      %p127 = scmp.eq.s32.totalorder %s27, 1
      %p128 = por %p126, %p127
      %p130 = scmp.ne.s32.totalorder %s113, %s129
      %p131 = scmp.eq.s32.totalorder %s27, 0
      %p132 = por %p130, %p131
      %s133 = ssub.s32 %s21, %s28
      %p134 = scmp.eq.s32.totalorder %s133, 0
      %s136 = sadd.s32 %s135, 1
      %s137 = scalar_select %p134, %s135, %s136
      %p140 = pneg %p134
      %p141 = scmp.eq.s32.totalorder %s21, 1
      %p142 = por %p140, %p141
      %p143 = scmp.ne.s32.totalorder %s135, %s138
      %p144 = scmp.eq.s32.totalorder %s21, 0
      %p145 = por %p143, %p144
      %p146 = scmp.ne.s32.totalorder %s135, %s138
      %p147 = scmp.eq.s32.totalorder %s26, 1
      %p148 = por %p146, %p147
      %p149 = scmp.ne.s32.totalorder %s138, %s139
      %p150 = scmp.eq.s32.totalorder %s26, 0
      %p151 = por %p149, %p150
      %p152 = scmp.ne.s32.totalorder %s138, %s139
      %p153 = scmp.eq.s32.totalorder %s27, 1
      %p154 = por %p152, %p153
      %p156 = scmp.ne.s32.totalorder %s139, %s155
      %p157 = scmp.eq.s32.totalorder %s27, 0
      %p158 = por %p156, %p157
      %s160 = sadd.s32 %s159, 1
      %p163 = scmp.eq.s32.totalorder %s21, 1
      %p164 = scmp.ne.s32.totalorder %s159, %s161
      %p165 = scmp.eq.s32.totalorder %s21, 0
      %p166 = por %p164, %p165
      %p167 = scmp.ne.s32.totalorder %s159, %s161
      %p168 = scmp.eq.s32.totalorder %s26, 1
      %p169 = por %p167, %p168
      %p170 = scmp.ne.s32.totalorder %s161, %s162
      %p171 = scmp.eq.s32.totalorder %s26, 0
      %p172 = por %p170, %p171
      %p173 = scmp.ne.s32.totalorder %s161, %s162
      %p174 = scmp.eq.s32.totalorder %s27, 1
      %p175 = por %p173, %p174
      %p177 = scmp.ne.s32.totalorder %s162, %s176
      %p178 = scmp.eq.s32.totalorder %s27, 0
      %p179 = por %p177, %p178
      %p180 = scmp.le.s32.totalorder 1, %s21
      %p181 = scmp.lt.s32.totalorder %s21, 3
      %p182 = pnand %p180, %p181
      %p183 = pneg %p182
      // Predicated region
      $region9: #{tpu_custom_call.1} parent=5 // pred_check
        _
      $region10: #{tpu_custom_call.1} parent=5 // pred_check_branch
        %185 = sbr.rel (%p182) target = $region12
      $region11: #{tpu_custom_call.1} parent=5 // pred_region
        %s186 = ssub.s32 %s21, 1
      $region12: #{tpu_custom_call.1} parent=5 // pred_fallthru
        _
      %p187 = scmp.lt.s32.totalorder %s21, 2
      // Predicated region
      $region13: #{tpu_custom_call.1} parent=5 // pred_check
        %p188 = pneg %p187
      $region14: #{tpu_custom_call.1} parent=5 // pred_check_branch
        %190 = sbr.rel (%p188) target = $region16
      $region15: #{tpu_custom_call.1} parent=5 // pred_region
        // Predicated region
        $region17: #{tpu_custom_call.1} parent=15 // pred_check
          %p191 = pneg %p41
        $region18: #{tpu_custom_call.1} parent=15 // pred_check_branch
          %193 = sbr.rel (%p191) target = $region20
        $region19: #{tpu_custom_call.1} parent=15 // pred_region
          %s194 = sand.u32 %s31, 1
          %s195 = scalar_lea.sflag [#allocation5], %s194
          %s196 = sand.u32 %s31, 1
          %s197 = smul.addr %s196, 16
          %s198 = scalar_lea.vmem [#allocation4], %s197
          %s199 = smul.u32 2, %s21
          %s200 = ssub.s32 3, %s199
          %p201 = scmp.lt.s32.totalorder %s200, 2
          %s202 = scalar_select %p201, %s200, 2
          %s203 = smul.u32 8, %s202
          %s204 = ssub.s32 16, %s203
          %s205 = sshll.u32 %s204, 4
          %206 = vsyncadd %s195, %s205
          %p207 = scmp.ne.s32.totalorder 0, %s203
          %s208 = smul.addr %s199, 8
          %s209 = scalar_lea.hbm %s0, %s208
          %s210 = smul.u32 8, %s202
          %s211 = sshll.u32 %s209, 4
          %s212 = int_to_ptr.hbm [resolvable:$true] %s211
          %s213 = sshll.u32 %s198, 4
          %s214 = int_to_ptr.vmem [resolvable:$true] %s213
          %s215 = sshll.u32 %s210, 4
          %219 = dma.hbm_to_vmem [thread:$0]  (%p207), %s212, %s215, %s214, %s195, 128, 128, 8
        $region20: #{tpu_custom_call.1} parent=15 // pred_fallthru
          _
        // Predicated region
        $region21: #{tpu_custom_call.1} parent=15 // pred_check
          %p220 = pneg %p67
        $region22: #{tpu_custom_call.1} parent=15 // pred_check_branch
          %222 = sbr.rel (%p220) target = $region24
        $region23: #{tpu_custom_call.1} parent=15 // pred_region
          %s223 = sand.u32 %s21, 1
          %s224 = scalar_lea.sflag [#allocation8], %s223
          %s225 = sand.u32 %s57, 1
          %s226 = smul.addr %s225, 16
          %s227 = scalar_lea.vmem [#allocation7], %s226
          %s228 = smul.u32 2, %s21
          %s229 = ssub.s32 3, %s228
          %p230 = scmp.lt.s32.totalorder %s229, 2
          %s231 = scalar_select %p230, %s229, 2
          %s232 = smul.u32 8, %s231
          %s233 = ssub.s32 16, %s232
          %s234 = sshll.u32 %s233, 4
          %235 = vsyncadd %s224, %s234
          %p236 = scmp.ne.s32.totalorder 0, %s232
          %s237 = smul.addr %s228, 8
          %s238 = scalar_lea.hbm %s1, %s237
          %s239 = smul.u32 8, %s231
          %s240 = sshll.u32 %s238, 4
          %s241 = int_to_ptr.hbm [resolvable:$true] %s240
          %s242 = sshll.u32 %s227, 4
          %s243 = int_to_ptr.vmem [resolvable:$true] %s242
          %s244 = sshll.u32 %s239, 4
          %248 = dma.hbm_to_vmem [thread:$0]  (%p236), %s241, %s244, %s243, %s224, 128, 128, 8
        $region24: #{tpu_custom_call.1} parent=15 // pred_fallthru
          _
        // Predicated region
        $region25: #{tpu_custom_call.1} parent=15 // pred_check
          %p249 = pneg %p93
        $region26: #{tpu_custom_call.1} parent=15 // pred_check_branch
          %251 = sbr.rel (%p249) target = $region28
        $region27: #{tpu_custom_call.1} parent=15 // pred_region
          %s252 = sand.u32 %s21, 1
          %s253 = scalar_lea.sflag [#allocation8], %s252
          %s254 = sand.u32 %s83, 1
          %s255 = smul.addr %s254, 16
          %s256 = scalar_lea.vmem [#allocation9], %s255
          %s257 = smul.u32 2, %s21
          %s258 = ssub.s32 3, %s257
          %p259 = scmp.lt.s32.totalorder %s258, 2
          %s260 = scalar_select %p259, %s258, 2
          %s261 = smul.u32 8, %s260
          %s262 = ssub.s32 16, %s261
          %s263 = sshll.u32 %s262, 4
          %264 = vsyncadd %s253, %s263
          %p265 = scmp.ne.s32.totalorder 0, %s261
          %s266 = smul.addr %s257, 8
          %s267 = scalar_lea.hbm %s2, %s266
          %s268 = smul.u32 8, %s260
          %s269 = sshll.u32 %s267, 4
          %s270 = int_to_ptr.hbm [resolvable:$true] %s269
          %s271 = sshll.u32 %s256, 4
          %s272 = int_to_ptr.vmem [resolvable:$true] %s271
          %s273 = sshll.u32 %s268, 4
          %277 = dma.hbm_to_vmem [thread:$0]  (%p265), %s270, %s273, %s272, %s253, 128, 128, 8
        $region28: #{tpu_custom_call.1} parent=15 // pred_fallthru
          _
        // Predicated region
        $region29: #{tpu_custom_call.1} parent=15 // pred_check
          %p278 = pneg %p119
        $region30: #{tpu_custom_call.1} parent=15 // pred_check_branch
          %280 = sbr.rel (%p278) target = $region32
        $region31: #{tpu_custom_call.1} parent=15 // pred_region
          %s281 = sand.u32 %s21, 1
          %s282 = scalar_lea.sflag [#allocation11], %s281
          %s283 = sand.u32 %s109, 1
          %s284 = smul.addr %s283, 16
          %s285 = scalar_lea.vmem [#allocation10], %s284
          %s286 = smul.u32 2, %s21
          %s287 = ssub.s32 3, %s286
          %p288 = scmp.lt.s32.totalorder %s287, 2
          %s289 = scalar_select %p288, %s287, 2
          %s290 = smul.u32 8, %s289
          %s291 = ssub.s32 16, %s290
          %s292 = sshll.u32 %s291, 4
          %293 = vsyncadd %s282, %s292
          %p294 = scmp.ne.s32.totalorder 0, %s290
          %s295 = smul.addr %s286, 8
          %s296 = scalar_lea.hbm %s3, %s295
          %s297 = smul.u32 8, %s289
          %s298 = sshll.u32 %s296, 4
          %s299 = int_to_ptr.hbm [resolvable:$true] %s298
          %s300 = sshll.u32 %s285, 4
          %s301 = int_to_ptr.vmem [resolvable:$true] %s300
          %s302 = sshll.u32 %s297, 4
          %306 = dma.hbm_to_vmem [thread:$0]  (%p294), %s299, %s302, %s301, %s282, 128, 128, 8
        $region32: #{tpu_custom_call.1} parent=15 // pred_fallthru
          _
        // Predicated region
        $region33: #{tpu_custom_call.1} parent=15 // pred_check
          %p307 = pneg %p145
        $region34: #{tpu_custom_call.1} parent=15 // pred_check_branch
          %309 = sbr.rel (%p307) target = $region36
        $region35: #{tpu_custom_call.1} parent=15 // pred_region
          %s310 = sand.u32 %s21, 1
          %s311 = scalar_lea.sflag [#allocation11], %s310
          %s312 = sand.u32 %s135, 1
          %s313 = smul.addr %s312, 16
          %s314 = scalar_lea.vmem [#allocation12], %s313
          %s315 = smul.u32 2, %s21
          %s316 = ssub.s32 3, %s315
          %p317 = scmp.lt.s32.totalorder %s316, 2
          %s318 = scalar_select %p317, %s316, 2
          %s319 = smul.u32 8, %s318
          %s320 = ssub.s32 16, %s319
          %s321 = sshll.u32 %s320, 4
          %322 = vsyncadd %s311, %s321
          %p323 = scmp.ne.s32.totalorder 0, %s319
          %s324 = smul.addr %s315, 8
          %s325 = scalar_lea.hbm %s4, %s324
          %s326 = smul.u32 8, %s318
          %s327 = sshll.u32 %s325, 4
          %s328 = int_to_ptr.hbm [resolvable:$true] %s327
          %s329 = sshll.u32 %s314, 4
          %s330 = int_to_ptr.vmem [resolvable:$true] %s329
          %s331 = sshll.u32 %s326, 4
          %335 = dma.hbm_to_vmem [thread:$0]  (%p323), %s328, %s331, %s330, %s311, 128, 128, 8
        $region36: #{tpu_custom_call.1} parent=15 // pred_fallthru
          _
      $region16: #{tpu_custom_call.1} parent=5 // pred_fallthru
        _
      %p336 = scmp.le.s32.totalorder 1, %s21
      %p337 = scmp.lt.s32.totalorder %s21, 3
      %p338 = pnand %p336, %p337
      %p339 = pneg %p338
      // Predicated region
      $region37: #{tpu_custom_call.1} parent=5 // pred_check
        _
      $region38: #{tpu_custom_call.1} parent=5 // pred_check_branch
        %341 = sbr.rel (%p338) target = $region40
      $region39: #{tpu_custom_call.1} parent=5 // pred_region
        %s342 = ssub.s32 %s21, 1
        %s343 = sand.u32 %s34, 1
        %s344 = scalar_lea.sflag [#allocation5], %s343
        %s345 = sand.u32 %s34, 1
        %s346 = smul.addr %s345, 16
        %s347 = scalar_lea.vmem [#allocation4], %s346
        // Predicated region
        $region41: #{tpu_custom_call.1} parent=39 // pred_check
          %p348 = pneg %p47
        $region42: #{tpu_custom_call.1} parent=39 // pred_check_branch
          %350 = sbr.rel (%p348) target = $region44
        $region43: #{tpu_custom_call.1} parent=39 // pred_region
          %352 = dma.done %s344, 256
        $region44: #{tpu_custom_call.1} parent=39 // pred_fallthru
          _
        %s353 = sand.u32 %s26, 1
        %s354 = scalar_lea.sflag [#allocation8], %s353
        %s355 = sand.u32 %s60, 1
        %s356 = smul.addr %s355, 16
        %s357 = scalar_lea.vmem [#allocation7], %s356
        // Predicated region
        $region45: #{tpu_custom_call.1} parent=39 // pred_check
          %p358 = pneg %p73
        $region46: #{tpu_custom_call.1} parent=39 // pred_check_branch
          %360 = sbr.rel (%p358) target = $region48
        $region47: #{tpu_custom_call.1} parent=39 // pred_region
          %362 = dma.done %s354, 256
        $region48: #{tpu_custom_call.1} parent=39 // pred_fallthru
          _
        %s363 = sand.u32 %s26, 1
        %s364 = scalar_lea.sflag [#allocation8], %s363
        %s365 = sand.u32 %s86, 1
        %s366 = smul.addr %s365, 16
        %s367 = scalar_lea.vmem [#allocation9], %s366
        // Predicated region
        $region49: #{tpu_custom_call.1} parent=39 // pred_check
          %p368 = pneg %p99
        $region50: #{tpu_custom_call.1} parent=39 // pred_check_branch
          %370 = sbr.rel (%p368) target = $region52
        $region51: #{tpu_custom_call.1} parent=39 // pred_region
          %372 = dma.done %s364, 256
        $region52: #{tpu_custom_call.1} parent=39 // pred_fallthru
          _
        %s373 = sand.u32 %s26, 1
        %s374 = scalar_lea.sflag [#allocation11], %s373
        %s375 = sand.u32 %s112, 1
        %s376 = smul.addr %s375, 16
        %s377 = scalar_lea.vmem [#allocation10], %s376
        // Predicated region
        $region53: #{tpu_custom_call.1} parent=39 // pred_check
          %p378 = pneg %p125
        $region54: #{tpu_custom_call.1} parent=39 // pred_check_branch
          %380 = sbr.rel (%p378) target = $region56
        $region55: #{tpu_custom_call.1} parent=39 // pred_region
          %382 = dma.done %s374, 256
        $region56: #{tpu_custom_call.1} parent=39 // pred_fallthru
          _
        %s383 = sand.u32 %s26, 1
        %s384 = scalar_lea.sflag [#allocation11], %s383
        %s385 = sand.u32 %s138, 1
        %s386 = smul.addr %s385, 16
        %s387 = scalar_lea.vmem [#allocation12], %s386
        // Predicated region
        $region57: #{tpu_custom_call.1} parent=39 // pred_check
          %p388 = pneg %p151
        $region58: #{tpu_custom_call.1} parent=39 // pred_check_branch
          %390 = sbr.rel (%p388) target = $region60
        $region59: #{tpu_custom_call.1} parent=39 // pred_region
          %392 = dma.done %s384, 256
        $region60: #{tpu_custom_call.1} parent=39 // pred_fallthru
          _
        %s393 = sand.u32 %s34, 1
        %s394 = scalar_lea.sflag [#allocation5], %s393
        %s395 = sand.u32 %s34, 1
        %s396 = smul.addr %s395, 16
        %s397 = scalar_lea.vmem [#allocation4], %s396
        %p398 = pneg %p47
        %p399 = pneg %p44
        %s400 = sand.u32 %s26, 1
        %s401 = scalar_lea.sflag [#allocation8], %s400
        %s402 = sand.u32 %s60, 1
        %s403 = smul.addr %s402, 16
        %s404 = scalar_lea.vmem [#allocation7], %s403
        %p405 = pneg %p73
        %p406 = pneg %p70
        %s407 = sand.u32 %s26, 1
        %s408 = scalar_lea.sflag [#allocation8], %s407
        %s409 = sand.u32 %s86, 1
        %s410 = smul.addr %s409, 16
        %s411 = scalar_lea.vmem [#allocation9], %s410
        %p412 = pneg %p99
        %p413 = pneg %p96
        %s414 = sand.u32 %s26, 1
        %s415 = scalar_lea.sflag [#allocation11], %s414
        %s416 = sand.u32 %s112, 1
        %s417 = smul.addr %s416, 16
        %s418 = scalar_lea.vmem [#allocation10], %s417
        %p419 = pneg %p125
        %p420 = pneg %p122
        %s421 = sand.u32 %s26, 1
        %s422 = scalar_lea.sflag [#allocation11], %s421
        %s423 = sand.u32 %s138, 1
        %s424 = smul.addr %s423, 16
        %s425 = scalar_lea.vmem [#allocation12], %s424
        %p426 = pneg %p151
        %p427 = pneg %p148
        %p428 = pneg %p172
        %p429 = pneg %p169
        %s430 = smul.u32 2, %s26
        %s431 = ssub.s32 3, %s430
        %p432 = scmp.lt.s32.totalorder %s431, 2
        %s433 = scalar_select %p432, %s431, 2
        %s434 = smul.u32 8, %s433
        %s435 = smul.u32 2, %s26
        %s436 = ssub.s32 3, %s435
        %p437 = scmp.lt.s32.totalorder %s436, 2
        %s438 = scalar_select %p437, %s436, 2
        %s439 = smul.u32 8, %s438
        %s440 = smul.u32 2, %s26
        %s441 = ssub.s32 3, %s440
        %p442 = scmp.lt.s32.totalorder %s441, 2
        %s443 = scalar_select %p442, %s441, 2
        %s444 = smul.u32 8, %s443
        %s445 = smul.u32 2, %s26
        %s446 = ssub.s32 3, %s445
        %p447 = scmp.lt.s32.totalorder %s446, 2
        %s448 = scalar_select %p447, %s446, 2
        %s449 = smul.u32 8, %s448
        %s450 = smul.u32 2, %s26
        %s451 = ssub.s32 3, %s450
        %p452 = scmp.lt.s32.totalorder %s451, 2
        %s453 = scalar_select %p452, %s451, 2
        %s454 = smul.u32 8, %s453
        %p455 = scmp.eq.s32.totalorder %s26, 0
        // Predicated region
        $region61: #{tpu_custom_call.1} parent=39 // pred_check
          %p456 = pneg %p455
        $region62: #{tpu_custom_call.1} parent=39 // pred_check_branch
          %458 = sbr.rel (%p456) target = $region64
        $region63: #{tpu_custom_call.1} parent=39 // pred_region
          %vm459 = vcmask 0
          %460 = vst.msk [vmem:[#allocation2] sm:$0x1] %vm459, 0.0
          %461 = vst.msk [vmem:[#allocation3] sm:$0x1] %vm459, 0.0
        $region64: #{tpu_custom_call.1} parent=39 // pred_fallthru
          _
        %s462 = smul.u32 %s26, 16
        %v463 = vlaneseq
        %v464 = vshrl.u32 %v463, 7
        %v465 = vadd.s32 %v464, 8
        %v466 = vstv %s462
        %v467 = vadd.s32 %v466, %v464
        %v468 = vadd.s32 %v466, %v465
        %vm469 = vcmp.lt.s32.totalorder %v467, 24
        %vm470 = vcmp.lt.s32.totalorder %v468, 24
        %v471 = vld [vmem:[%s347] sm:$0xff]
        %v472 = vld [vmem:[%s347 + $0x8] sm:$0xff]
        %v473 = vld [vmem:[%s357] sm:$0xff]
        %v474 = vld [vmem:[%s357 + $0x8] sm:$0xff]
        %vm475 = vcmp.gt.f32.partialorder %v473, 0.5
        %vm476 = vcmp.gt.f32.partialorder %v474, 0.5
        %v477 = vsub.f32 1.0, %v471
        %v478 = vsub.f32 1.0, %v472
        %v479 = vsel %vm475, %v471, %v477
        %v480 = vsel %vm476, %v472, %v478
        %v481 = vlog2.pop %v479
        %v482 = vmul.f32 %v481, 0.6931472
        %v483 = vlog2.pop %v480
        %v484 = vmul.f32 %v483, 0.6931472
        %v485 = vmax.f32 %v482, -100.0
        %v486 = vmax.f32 %v484, -100.0
        %v487 = vsub.f32 0.0, %v485
        %v488 = vsub.f32 0.0, %v486
        %v489 = vsel %vm469, 1, 0
        %v490 = vsel %vm470, 1, 0
        %vm491 = vcmp.eq.s32.totalorder %v489, 1
        %vm492 = vcmp.eq.s32.totalorder %v490, 1
        %v493 = vsel %vm491, %v487, 0.0
        %v494 = vsel %vm492, %v488, 0.0
        %v495 = vld [vmem:[#allocation2] sm:$0x1]
        %v496 = vadd.f32 %v493, %v494
        %497 = vadd.xlane.f32.xlu0 %v496
        %v498 = vpop.xlane.xlu0 %497
        %v499 = vrot.slane %v498, 4
        %v500 = vadd.f32 %v498, %v499
        %v501 = vrot.slane %v500, 2
        %v502 = vadd.f32 %v500, %v501
        %v503 = vrot.slane %v502, 1
        %v504 = vadd.f32 %v502, %v503
        %s505 = vtos %v504
        %v506 = vstv %s505
        %v507 = vadd.f32 %v495, %v506
        %vm508 = vcmask 0
        %509 = vst.msk [vmem:[#allocation2] sm:$0x1] %vm508, %v507
        %v510 = vld [vmem:[%s367] sm:$0xff]
        %v511 = vld [vmem:[%s367 + $0x8] sm:$0xff]
        %v512 = vld [vmem:[%s377] sm:$0xff]
        %v513 = vld [vmem:[%s377 + $0x8] sm:$0xff]
        %v514 = vsub.f32 %v510, %v512
        %v515 = vsub.f32 %v511, %v513
        %v516 = vadd.f32 %v514, 1e-06
        %v517 = vadd.f32 %v515, 1e-06
        %v518 = vld [vmem:[%s387] sm:$0xff]
        %v519 = vld [vmem:[%s387 + $0x8] sm:$0xff]
        %v520 = vsub.f32 %v510, %v518
        %v521 = vsub.f32 %v511, %v519
        %v522 = vadd.f32 %v520, 1e-06
        %v523 = vadd.f32 %v521, 1e-06
        %v524 = vmul.f32 %v516, %v516
        %v525 = vmul.f32 %v517, %v517
        %526 = vadd.xlane.f32.xlu0 %v524
        %v527 = vpop.xlane.xlu0 %526
        %528 = vadd.xlane.f32.xlu0 %v525
        %v529 = vpop.xlane.xlu0 %528
        %v530 = vrsqrt.pop %v527
        %v531 = vmul.f32 %v530, %v527
        %v532 = vmul.f32 %v531, %v530
        %v533 = vmul.f32 0.5, %v532
        %v534 = vsub.f32 1.5, %v533
        %v535 = vmul.f32 %v530, %v534
        %v536 = vmul.f32 %v527, %v535
        %vm537 = vcmp.eq.f32.partialorder %v527, inf
        %v538 = vsel %vm537, %v527, %v536
        %vm539 = vcmp.eq.f32.partialorder %v527, 0.0
        %v540 = vand.u32 %v527, 2147483648
        %v541 = vsel %vm539, %v540, %v538
        %v542 = vrsqrt.pop %v529
        %v543 = vmul.f32 %v542, %v529
        %v544 = vmul.f32 %v543, %v542
        %v545 = vmul.f32 0.5, %v544
        %v546 = vsub.f32 1.5, %v545
        %v547 = vmul.f32 %v542, %v546
        %v548 = vmul.f32 %v529, %v547
        %vm549 = vcmp.eq.f32.partialorder %v529, inf
        %v550 = vsel %vm549, %v529, %v548
        %vm551 = vcmp.eq.f32.partialorder %v529, 0.0
        %v552 = vand.u32 %v529, 2147483648
        %v553 = vsel %vm551, %v552, %v550
        %v554 = vmul.f32 %v522, %v522
        %v555 = vmul.f32 %v523, %v523
        %556 = vadd.xlane.f32.xlu0 %v554
        %v557 = vpop.xlane.xlu0 %556
        %558 = vadd.xlane.f32.xlu0 %v555
        %v559 = vpop.xlane.xlu0 %558
        %v560 = vrsqrt.pop %v557
        %v561 = vmul.f32 %v560, %v557
        %v562 = vmul.f32 %v561, %v560
        %v563 = vmul.f32 0.5, %v562
        %v564 = vsub.f32 1.5, %v563
        %v565 = vmul.f32 %v560, %v564
        %v566 = vmul.f32 %v557, %v565
        %vm567 = vcmp.eq.f32.partialorder %v557, inf
        %v568 = vsel %vm567, %v557, %v566
        %vm569 = vcmp.eq.f32.partialorder %v557, 0.0
        %v570 = vand.u32 %v557, 2147483648
        %v571 = vsel %vm569, %v570, %v568
        %v572 = vrsqrt.pop %v559
        %v573 = vmul.f32 %v572, %v559
        %v574 = vmul.f32 %v573, %v572
        %v575 = vmul.f32 0.5, %v574
        %v576 = vsub.f32 1.5, %v575
        %v577 = vmul.f32 %v572, %v576
        %v578 = vmul.f32 %v559, %v577
        %vm579 = vcmp.eq.f32.partialorder %v559, inf
        %v580 = vsel %vm579, %v559, %v578
        %vm581 = vcmp.eq.f32.partialorder %v559, 0.0
        %v582 = vand.u32 %v559, 2147483648
        %v583 = vsel %vm581, %v582, %v580
        %v584 = vsub.f32 %v541, %v571
        %v585 = vsub.f32 %v553, %v583
        %v586 = vadd.f32 %v584, 0.3
        %v587 = vadd.f32 %v585, 0.3
        %v588 = vmax.f32 %v586, 0.0
        %v589 = vmax.f32 %v587, 0.0
        %v590 = vsel %vm469, %v588, 0.0
        %v591 = vsel %vm470, %v589, 0.0
        %v592 = vld [vmem:[#allocation3] sm:$0x1]
        %vm593 = vcmask 7168
        %v594 = vsel %vm593, %v590, 0.0
        %v595 = vsel %vm593, %v591, 0.0
        %v596 = vadd.f32 %v594, %v595
        %597 = vadd.xlane.f32.xlu0 %v596
        %v598 = vpop.xlane.xlu0 %597
        %v599 = vrot.slane %v598, 4
        %v600 = vadd.f32 %v598, %v599
        %v601 = vrot.slane %v600, 2
        %v602 = vadd.f32 %v600, %v601
        %v603 = vrot.slane %v602, 1
        %v604 = vadd.f32 %v602, %v603
        %s605 = vtos %v604
        %v606 = vstv %s605
        %v607 = vadd.f32 %v592, %v606
        %608 = vst.msk [vmem:[#allocation3] sm:$0x1] %vm508, %v607
        %p609 = scmp.eq.s32.totalorder %s26, 1
        // Predicated region
        $region65: #{tpu_custom_call.1} parent=39 // pred_check
          %p610 = pneg %p609
        $region66: #{tpu_custom_call.1} parent=39 // pred_check_branch
          %612 = sbr.rel (%p610) target = $region68
        $region67: #{tpu_custom_call.1} parent=39 // pred_region
          %v613 = vld [vmem:[#allocation2] sm:$0x1]
          %v614 = vmul.f32 %v613, 0.00032552084
          %v615 = vld [vmem:[#allocation3] sm:$0x1]
          %v616 = vmul.f32 %v615, 0.041666668
          %v617 = vadd.f32 %v614, %v616
          %v618 = vlaneseq
          %v619 = vand.u32 %v618, 127
          %vm620 = vcmp.eq.s32.totalorder %v619, 0
          %vm621 = vcmp.eq.s32.totalorder %v619, 1
          %vm622 = vcmp.eq.s32.totalorder %v619, 2
          %624 = vset.pattern.permute.xlu0 0
          %625 = vperm.xlu0 %624, %v616
          %v626 = vpop.permute.xlu0 %625
          %v628 = vperm.slane %v626, 0
          %v629 = vsel %vm622, %v628, 0.0
          %631 = vset.pattern.permute.xlu0 0
          %632 = vperm.xlu0 %631, %v614
          %v633 = vpop.permute.xlu0 %632
          %v635 = vperm.slane %v633, 0
          %v636 = vsel %vm621, %v635, %v629
          %638 = vset.pattern.permute.xlu0 0
          %639 = vperm.xlu0 %638, %v617
          %v640 = vpop.permute.xlu0 %639
          %v642 = vperm.slane %v640, 0
          %v643 = vsel %vm620, %v642, %v636
          %644 = vst [vmem:[#allocation13] sm:$0x1] %v643
        $region68: #{tpu_custom_call.1} parent=39 // pred_fallthru
          _
        // Predicated region
        $region69: #{tpu_custom_call.1} parent=39 // pred_check
          %p645 = pneg %p169
        $region70: #{tpu_custom_call.1} parent=39 // pred_check_branch
          %647 = sbr.rel (%p645) target = $region72
        $region71: #{tpu_custom_call.1} parent=39 // pred_region
          %649 = vsyncadd [#allocation6], 0
          %s651 = sshll.u32 [#allocation13], 4
          %s652 = int_to_ptr.vmem [resolvable:$true] %s651
          %s653 = sshll.u32 %s5, 4
          %s654 = int_to_ptr.hbm [resolvable:$true] %s653
          %656 = dma.vmem_to_hbm [thread:$0]  %s652, 16, %s654, [#allocation6]
        $region72: #{tpu_custom_call.1} parent=39 // pred_fallthru
          _
        // Predicated region
        $region73: #{tpu_custom_call.1} parent=39 // pred_check
          %p657 = pneg %p169
        $region74: #{tpu_custom_call.1} parent=39 // pred_check_branch
          %659 = sbr.rel (%p657) target = $region76
        $region75: #{tpu_custom_call.1} parent=39 // pred_region
          %661 = dma.done [#allocation6], 16
        $region76: #{tpu_custom_call.1} parent=39 // pred_fallthru
          _
      $region40: #{tpu_custom_call.1} parent=5 // pred_fallthru
        _
      %p662 = scmp.le.s32.totalorder 2, %s21
      // Predicated region
      $region77: #{tpu_custom_call.1} parent=5 // pred_check
        %p663 = pneg %p662
      $region78: #{tpu_custom_call.1} parent=5 // pred_check_branch
        %665 = sbr.rel (%p663) target = $region80
      $region79: #{tpu_custom_call.1} parent=5 // pred_region
        %s666 = ssub.s32 %s21, 2
      $region80: #{tpu_custom_call.1} parent=5 // pred_fallthru
        _
    $region6: #{tpu_custom_call.1} parent=1 // loop_footer
      %s25 = sadd.s32 1, %s21
    $region7: #{tpu_custom_call.1} parent=1 // loop_footer_branch
      %20 = sbr.rel target = $region3
    $region8: #{tpu_custom_call.1} parent=1 // loop_exit
      _
    %667 = vsyncpa [#allocation5], 1
    %s668 = scalar_lea.sflag [#allocation5], 1
    %669 = vsyncpa %s668, 1
    %670 = vsyncpa [#allocation8], 1
    %s671 = scalar_lea.sflag [#allocation8], 1
    %672 = vsyncpa %s671, 1
    %673 = vsyncpa [#allocation11], 1
    %s674 = scalar_lea.sflag [#allocation11], 1
    %675 = vsyncpa %s674, 1
    %676 = vsyncpa [#allocation6], 1
    %s677 = scalar_lea.sflag [#allocation6], 1
    %678 = vsyncpa %s677, 1

</llo_original>
